<compile_context>
chip_gen: v5e
topology: v5e:2x2
jax: 0.10.0
libtpu: 0.0.40
codegen_flags: <defaults>
</compile_context>

<pallas_src>
import jax
import jax.numpy as jnp
from jax.experimental import pallas as pl
from jax.experimental.pallas import tpu as pltpu


def _cdiv(a, b):
    return -(-a // b)


def _adversary_kernel(x_ref, attack_ref, inv_proj_ref, mask_ref, o_ref):
    x = x_ref[...]                # (TS, D)
    atk = attack_ref[...]         # (TS, N)
    w = inv_proj_ref[...]         # (N, D), resident across grid steps
    m = mask_ref[...]             # (TS, 1) int32
    # unprojected_attack = attack @ inv_proj, f32 accumulation on the MXU.
    up = jnp.dot(atk, w, preferred_element_type=jnp.float32)
    # Select (not mask-multiply) so masked-off rows are bit-identical to x.
    o_ref[...] = jnp.where(m != 0, x + up.astype(x.dtype), x)


def _choose_seq_tile(B, S, D, N, x_item, atk_item, proj_item, proj_bufs):
    """Pick the seq tile TS and a matching explicit VMEM limit (bytes)."""
    resident = proj_bufs * N * D * proj_item                 # inv_proj footprint
    # Double-buffered per-row bytes: x + out (x dtype), attack, mask (int32).
    per_row_db = 2 * (2 * D * x_item + N * atk_item + 4)
    budget = 32 * 1024 * 1024                                # safe on v5e/v6e/v7x
    ts_cap = max(8, (budget - resident) // per_row_db)
    # Target >= ~2 MiB streamed per step (measured tile sweeps: 29% -> 85% of
    # HBM roofline going from small to MiB-scale tiles).
    per_row_stream = D * x_item + N * atk_item + 4
    ts_target = max(8, _cdiv(2 * 1024 * 1024, per_row_stream))
    ts = min(S, ts_target, ts_cap)
    if ts < S:
        ts = max(8, (ts // 8) * 8)                           # 8-sublane alignment
    # v7x megacore: keep >= 4 grid steps when possible so both TCs get work.
    while B * _cdiv(S, ts) < 4 and ts > 8:
        ts = max(8, ((ts // 2) // 8) * 8)
        if ts == 8:
            break
    working_set = resident + per_row_db * ts
    vmem_limit = int(working_set * 1.3) + (2 << 20)          # ~30% + 2 MiB headroom
    vmem_limit = min(max(vmem_limit, 16 << 20), 48 << 20)
    return ts, vmem_limit


def whitened_gd_adversary_forward(x, attack, inv_proj, attack_mask):
    """x: (B, S, D); attack: (B, S_a >= S, N); inv_proj: (N, D); attack_mask: (B, S_a) bool."""
    B, S, D = x.shape
    Ba, Sa, N = attack.shape
    Ni, Di = inv_proj.shape
    assert Ba == B and Sa >= S and Ni == N and Di == D and attack_mask.shape == (B, Sa)

    # bf16 activations: run the MXU with bf16 operands (full rate on v6e/v7x,
    # halves attack/inv_proj DMA bytes); accumulation stays f32 in the kernel.
    if x.dtype == jnp.bfloat16:
        attack = attack.astype(jnp.bfloat16)
        inv_proj = inv_proj.astype(jnp.bfloat16)

    # (B, Sa) bool -> (B, Sa, 1) int32.  Tiny (B*Sa elements); the only
    # wrapper-side materialization.  x / attack are passed through untouched.
    mask3 = attack_mask.astype(jnp.int32)[..., None]

    x_item = jnp.dtype(x.dtype).itemsize
    atk_item = jnp.dtype(attack.dtype).itemsize
    proj_item = jnp.dtype(inv_proj.dtype).itemsize

    # Single-buffer the resident inv_proj only when it is large enough to matter
    # (its index_map is constant, so extra buffers buy nothing).
    proj_bufs = 1 if N * D * proj_item >= (4 << 20) else 2
    ts, vmem_limit = _choose_seq_tile(B, S, D, N, x_item, atk_item, proj_item, proj_bufs)

    proj_spec_kwargs = {}
    if proj_bufs == 1:
        proj_spec_kwargs["pipeline_mode"] = pl.Buffered(1)

    grid = (B, _cdiv(S, ts))

    out = pl.pallas_call(
        _adversary_kernel,
        out_shape=jax.ShapeDtypeStruct((B, S, D), x.dtype),
        grid_spec=pltpu.PrefetchScalarGridSpec(
            num_scalar_prefetch=0,
            grid=grid,
            in_specs=[
                # x rows (leading batch dim squeezed out of the kernel view)
                pl.BlockSpec((None, ts, D), lambda b, s: (b, s, 0)),
                # attack rows, read straight from the original (B, Sa, N) array
                pl.BlockSpec((None, ts, N), lambda b, s: (b, s, 0)),
                # inv_proj: constant block index -> fetched once, stays resident
                pl.BlockSpec((N, D), lambda b, s: (0, 0), **proj_spec_kwargs),
                # mask rows, read from the original (B, Sa, 1) array
                pl.BlockSpec((None, ts, 1), lambda b, s: (b, s, 0)),
            ],
            out_specs=pl.BlockSpec((None, ts, D), lambda b, s: (b, s, 0)),
        ),
        compiler_params=pltpu.CompilerParams(
            dimension_semantics=("parallel", "parallel"),
            vmem_limit_bytes=vmem_limit,
        ),
        # In-place masked add of the caller's x (true in-place under jit+donation).
        input_output_aliases={0: 0},
    )(x, attack, inv_proj, mask3)

    return out


def clip_attack(attack, epsilon):
    # mirrors WhitenedGDAdversary.clip_attack (init-time, outside the hot path)
    norms = jnp.linalg.norm(attack, axis=-1, keepdims=True)
    scale = jnp.maximum(norms / epsilon, 1.0)
    return attack / scale


if __name__ == "__main__":
    B, S, D = 2, 8, 32
    epsilon = 1.0

    key = jax.random.PRNGKey(0)
    k_attack, k_proj, k_x, k_mask = jax.random.split(key, 4)

    # deterministic init mirroring __init__: attack ~ randn, then clipped
    attack = jax.random.normal(k_attack, (B, S, D), dtype=jnp.float32)
    attack = clip_attack(attack, epsilon)

    # proj: well-conditioned random matrix; inv_proj = inverse(proj) (init-time glue)
    proj = jax.random.normal(k_proj, (D, D), dtype=jnp.float32) + D * jnp.eye(D, dtype=jnp.float32)
    inv_proj = jnp.linalg.inv(proj)

    attack_mask = jax.random.bernoulli(k_mask, 0.5, (B, S))
    x = jax.random.normal(k_x, (B, S, D), dtype=jnp.float32)

    out = whitened_gd_adversary_forward(x, attack, inv_proj, attack_mask)
    out = jax.block_until_ready(out)

    # pure-JAX reference check
    up_ref = jnp.einsum('nd,bsn->bsd', inv_proj, attack[:, :S, :])
    ref = jnp.where(attack_mask[:, :S, None], x + up_ref.astype(x.dtype), x)
    assert jnp.allclose(out, ref, atol=1e-5, rtol=1e-5), "mismatch vs reference"

    print("KERNEL_OK")
</pallas_src>

<mosaic_0001>
module attributes {stable_mosaic.version = 11 : i64} {
  func.func @_adversary_kernel(%arg0: i32, %arg1: i32, %arg2: memref<1x8x32xf32, #tpu.memory_space<vmem>>, %arg3: memref<1x8x32xf32, #tpu.memory_space<vmem>>, %arg4: memref<32x32xf32, #tpu.memory_space<vmem>>, %arg5: memref<1x8x1xi32, #tpu.memory_space<vmem>>, %arg6: memref<1x8x32xf32, #tpu.memory_space<vmem>>) attributes {dimension_semantics = [#tpu.dimension_semantics<parallel>, #tpu.dimension_semantics<parallel>], iteration_bounds = array<i64: 2, 1>, scalar_prefetch = 0 : i64, scratch_operands = 0 : i64, tpu.core_type = #tpu.core_type<tc>, window_params = [{transform_indices = @transform_0, window_bounds = array<i64: 1, 8, 32>}, {transform_indices = @transform_1, window_bounds = array<i64: 1, 8, 32>}, {pipeline_mode = #tpu.pipeline_mode<synchronous>, transform_indices = @transform_2, window_bounds = array<i64: 32, 32>}, {transform_indices = @transform_3, window_bounds = array<i64: 1, 8, 1>}, {transform_indices = @transform_4, window_bounds = array<i64: 1, 8, 32>}]} {
    %c0 = arith.constant 0 : index
    %c0_0 = arith.constant 0 : index
    %c0_1 = arith.constant 0 : index
    %0 = vector.load %arg2[%c0, %c0_0, %c0_1] : memref<1x8x32xf32, #tpu.memory_space<vmem>>, vector<1x8x32xf32>
    %1 = vector.shape_cast %0 : vector<1x8x32xf32> to vector<8x32xf32>
    %c0_2 = arith.constant 0 : index
    %c0_3 = arith.constant 0 : index
    %c0_4 = arith.constant 0 : index
    %2 = vector.load %arg3[%c0_2, %c0_3, %c0_4] : memref<1x8x32xf32, #tpu.memory_space<vmem>>, vector<1x8x32xf32>
    %3 = vector.shape_cast %2 : vector<1x8x32xf32> to vector<8x32xf32>
    %c0_5 = arith.constant 0 : index
    %c0_6 = arith.constant 0 : index
    %4 = vector.load %arg4[%c0_5, %c0_6] : memref<32x32xf32, #tpu.memory_space<vmem>>, vector<32x32xf32>
    %c0_7 = arith.constant 0 : index
    %c0_8 = arith.constant 0 : index
    %c0_9 = arith.constant 0 : index
    %5 = vector.load %arg5[%c0_7, %c0_8, %c0_9] : memref<1x8x1xi32, #tpu.memory_space<vmem>>, vector<1x8x1xi32>
    %6 = vector.shape_cast %5 : vector<1x8x1xi32> to vector<8x1xi32>
    %cst = arith.constant dense<0.000000e+00> : vector<8x32xf32>
    %7 = tpu.matmul %3, %4, %cst {dimension_numbers = #tpu.dot_dimension_numbers<[1], [0], [0], [1], [0, 0, 1, 1], [], []>} : vector<8x32xf32>, vector<32x32xf32>, vector<8x32xf32> -> vector<8x32xf32>
    %c0_i32 = arith.constant 0 : i32
    %8 = vector.broadcast %c0_i32 : i32 to vector<8x1xi32>
    %9 = arith.cmpi ne, %6, %8 : vector<8x1xi32>
    %10 = arith.addf %1, %7 : vector<8x32xf32>
    %11 = vector.shape_cast %9 : vector<8x1xi1> to vector<8x1xi1>
    %12 = vector.broadcast %11 : vector<8x1xi1> to vector<8x32xi1>
    %13 = arith.select %12, %10, %1 : vector<8x32xi1>, vector<8x32xf32>
    %c0_10 = arith.constant 0 : index
    %c0_11 = arith.constant 0 : index
    %c0_12 = arith.constant 0 : index
    %14 = vector.load %arg6[%c0_10, %c0_11, %c0_12] : memref<1x8x32xf32, #tpu.memory_space<vmem>>, vector<1x8x32xf32>
    %15 = vector.shape_cast %14 : vector<1x8x32xf32> to vector<8x32xf32>
    %16 = vector.shape_cast %13 : vector<8x32xf32> to vector<1x8x32xf32>
    tpu.vector_store %arg6[%c0_10, %c0_11, %c0_12], %16 {strides = array<i32>} : memref<1x8x32xf32, #tpu.memory_space<vmem>>, vector<1x8x32xf32>,
    return
  }
  func.func @transform_0(%arg0: i32, %arg1: i32) -> (i32, i32, i32) {
    %c0_i32 = arith.constant 0 : i32
    %c0_i32_0 = arith.constant 0 : i32
    return %arg0, %arg1, %c0_i32 : i32, i32, i32
  }
  func.func @transform_1(%arg0: i32, %arg1: i32) -> (i32, i32, i32) {
    %c0_i32 = arith.constant 0 : i32
    %c0_i32_0 = arith.constant 0 : i32
    return %arg0, %arg1, %c0_i32 : i32, i32, i32
  }
  func.func @transform_2(%arg0: i32, %arg1: i32) -> (i32, i32) {
    %c0_i32 = arith.constant 0 : i32
    %c0_i32_0 = arith.constant 0 : i32
    %c0_i32_1 = arith.constant 0 : i32
    return %c0_i32, %c0_i32_0 : i32, i32
  }
  func.func @transform_3(%arg0: i32, %arg1: i32) -> (i32, i32, i32) {
    %c0_i32 = arith.constant 0 : i32
    %c0_i32_0 = arith.constant 0 : i32
    return %arg0, %arg1, %c0_i32 : i32, i32, i32
  }
  func.func @transform_4(%arg0: i32, %arg1: i32) -> (i32, i32, i32) {
    %c0_i32 = arith.constant 0 : i32
    %c0_i32_0 = arith.constant 0 : i32
    return %arg0, %arg1, %c0_i32 : i32, i32, i32
  }
}

</mosaic_0001>

<llo_original>
// kernel: tpu_custom_call.1
$region0: #{tpu_custom_call.1}
  #allocation0 [shape = 'u32[]', space=smem, size = 0x4, offset = 0x4, fixed_abs, tag = 'smem constant byte address 0x4 - core index']
  #allocation1 [shape = 'u32[72,128]{1,0:T(1,128)}', space=vmem, size = 0x9000, scoped, tag = 'internal scratch']
  %s0 = inlined_call_operand.hbm [shape: f32[2,8,32], index: 0, kind: input, shape index: {}, may-alias: {0,4}]
  %s1 = inlined_call_operand.vmem [shape: f32[2,8,32], index: 1, kind: input, shape index: {}]
  %s2 = inlined_call_operand.vmem [shape: f32[32,32], index: 2, kind: input, shape index: {}]
  %s3 = inlined_call_operand.vmem [shape: s32[2,8,1], index: 3, kind: input, shape index: {}]
  %s4 = inlined_call_operand.hbm [shape: f32[2,8,32], index: 4, kind: output, shape index: {}, may-alias: {0,4}]
  %s5 = sld [smem:[#allocation0]]
  $region53: #{tpu_custom_call.1} parent=0
    _
  %s7 = ssub.s32 1, %s5
  %s8 = scalar_select 0, %s7, %s5
  $region1: #{tpu_custom_call.1} parent=0
    #allocation2 [shape = 'u8[8192]{0}', space=vmem, size = 0x2000, scoped, tag = 'input window, operand 0']
    #allocation3 [shape = 's32[2]{0}', space=sflag, size = 0x8, scoped, tag = 'scoped memory for tpu_custom_call.1']
    #allocation4 [shape = 's32[2]{0}', space=sflag, size = 0x8, scoped, tag = 'scoped memory for tpu_custom_call.1']
    #allocation5 [shape = 'u8[8192]{0}', space=vmem, size = 0x2000, scoped, tag = 'output window, operand 0']
    %9 = vsyncpa [#allocation3], 0
    %s10 = scalar_lea.sflag [#allocation3], 1
    %11 = vsyncpa %s10, 0
    %12 = vsyncpa [#allocation4], 0
    %s13 = scalar_lea.sflag [#allocation4], 1
    %14 = vsyncpa %s13, 0
    loop: start=0, step=1, limit=4
    $region2: #{tpu_custom_call.1} parent=1 // loop_pre_header
      _
    $region3: #{tpu_custom_call.1} parent=1 // loop_header
      %s16 = sphi 0, %s20
      %p17 = scmp.ge.s32.totalorder %s16, 4
      %s23 = sphi 0, %s35
      %s24 = sphi 0, %s31
      %s25 = sphi 0, %s23
      %s26 = sphi 0, %s24
      %s27 = sphi 0, %s25
      %s28 = sphi 0, %s26
      %s40 = sphi 0, %s42
      %s43 = sphi 0, %s40
      %s44 = sphi 0, %s43
      %s60 = sphi 0, %s44
      %s68 = sphi 0, %s70
      %s71 = sphi 0, %s68
      %s72 = sphi 0, %s71
      %s88 = sphi 0, %s72
      %s92 = sphi 0, %s92
      %s94 = sphi 0, %s92
      %s95 = sphi 0, %s94
      %s109 = sphi 0, %s95
      %s117 = sphi 0, %s119
      %s120 = sphi 0, %s117
      %s121 = sphi 0, %s120
      %s137 = sphi 0, %s121
      %s145 = sphi 0, %s147
      %s148 = sphi 0, %s145
      %s149 = sphi 0, %s148
      %s165 = sphi 0, %s149
    $region4: #{tpu_custom_call.1} parent=1 // loop_header_branch
      %19 = sbr.rel (%p17) target = $region8
    $region5: #{tpu_custom_call.1} parent=1 // loop_body
      %s21 = ssub.s32 %s16, 1
      %s22 = ssub.s32 %s16, 2
      %s29 = sadd.s32 1, %s24
      %p30 = scmp.ge.s32.totalorder %s29, 1
      %s31 = scalar_select %p30, 0, %s29
      %s32 = sadd.s32 1, %s23
      %s33 = scalar_select %p30, %s32, %s23
      %p34 = scmp.ge.s32.totalorder %s33, 2
      %s35 = scalar_select %p34, 0, %s33
      %s36 = ssub.s32 %s23, %s35
      %s37 = ssub.s32 %s24, %s31
      %s38 = sor.u32 %s36, %s37
      %p39 = scmp.eq.s32.totalorder %s38, 0
      %s41 = sadd.s32 %s40, 1
      %s42 = scalar_select %p39, %s40, %s41
      %p45 = pneg %p39
      %p46 = scmp.eq.s32.totalorder %s16, 1
      %p47 = por %p45, %p46
      %p48 = scmp.ne.s32.totalorder %s40, %s43
      %p49 = scmp.eq.s32.totalorder %s16, 0
      %p50 = por %p48, %p49
      %p51 = scmp.ne.s32.totalorder %s40, %s43
      %p52 = scmp.eq.s32.totalorder %s21, 1
      %p53 = por %p51, %p52
      %p54 = scmp.ne.s32.totalorder %s43, %s44
      %p55 = scmp.eq.s32.totalorder %s21, 0
      %p56 = por %p54, %p55
      %p57 = scmp.ne.s32.totalorder %s43, %s44
      %p58 = scmp.eq.s32.totalorder %s22, 1
      %p59 = por %p57, %p58
      %p61 = scmp.ne.s32.totalorder %s44, %s60
      %p62 = scmp.eq.s32.totalorder %s22, 0
      %p63 = por %p61, %p62
      %s64 = ssub.s32 %s23, %s35
      %s65 = ssub.s32 %s24, %s31
      %s66 = sor.u32 %s64, %s65
      %p67 = scmp.eq.s32.totalorder %s66, 0
      %s69 = sadd.s32 %s68, 1
      %s70 = scalar_select %p67, %s68, %s69
      %p73 = pneg %p67
      %p74 = scmp.eq.s32.totalorder %s16, 1
      %p75 = por %p73, %p74
      %p76 = scmp.ne.s32.totalorder %s68, %s71
      %p77 = scmp.eq.s32.totalorder %s16, 0
      %p78 = por %p76, %p77
      %p79 = scmp.ne.s32.totalorder %s68, %s71
      %p80 = scmp.eq.s32.totalorder %s21, 1
      %p81 = por %p79, %p80
      %p82 = scmp.ne.s32.totalorder %s71, %s72
      %p83 = scmp.eq.s32.totalorder %s21, 0
      %p84 = por %p82, %p83
      %p85 = scmp.ne.s32.totalorder %s71, %s72
      %p86 = scmp.eq.s32.totalorder %s22, 1
      %p87 = por %p85, %p86
      %p89 = scmp.ne.s32.totalorder %s72, %s88
      %p90 = scmp.eq.s32.totalorder %s22, 0
      %p91 = por %p89, %p90
      %s93 = sadd.s32 %s92, 1
      %p96 = scmp.eq.s32.totalorder %s16, 1
      %p97 = scmp.ne.s32.totalorder %s92, %s94
      %p98 = scmp.eq.s32.totalorder %s16, 0
      %p99 = por %p97, %p98
      %p100 = scmp.ne.s32.totalorder %s92, %s94
      %p101 = scmp.eq.s32.totalorder %s21, 1
      %p102 = por %p100, %p101
      %p103 = scmp.ne.s32.totalorder %s94, %s95
      %p104 = scmp.eq.s32.totalorder %s21, 0
      %p105 = por %p103, %p104
      %p106 = scmp.ne.s32.totalorder %s94, %s95
      %p107 = scmp.eq.s32.totalorder %s22, 1
      %p108 = por %p106, %p107
      %p110 = scmp.ne.s32.totalorder %s95, %s109
      %p111 = scmp.eq.s32.totalorder %s22, 0
      %p112 = por %p110, %p111
      %s113 = ssub.s32 %s23, %s35
      %s114 = ssub.s32 %s24, %s31
      %s115 = sor.u32 %s113, %s114
      %p116 = scmp.eq.s32.totalorder %s115, 0
      %s118 = sadd.s32 %s117, 1
      %s119 = scalar_select %p116, %s117, %s118
      %p122 = pneg %p116
      %p123 = scmp.eq.s32.totalorder %s16, 1
      %p124 = por %p122, %p123
      %p125 = scmp.ne.s32.totalorder %s117, %s120
      %p126 = scmp.eq.s32.totalorder %s16, 0
      %p127 = por %p125, %p126
      %p128 = scmp.ne.s32.totalorder %s117, %s120
      %p129 = scmp.eq.s32.totalorder %s21, 1
      %p130 = por %p128, %p129
      %p131 = scmp.ne.s32.totalorder %s120, %s121
      %p132 = scmp.eq.s32.totalorder %s21, 0
      %p133 = por %p131, %p132
      %p134 = scmp.ne.s32.totalorder %s120, %s121
      %p135 = scmp.eq.s32.totalorder %s22, 1
      %p136 = por %p134, %p135
      %p138 = scmp.ne.s32.totalorder %s121, %s137
      %p139 = scmp.eq.s32.totalorder %s22, 0
      %p140 = por %p138, %p139
      %s141 = ssub.s32 %s23, %s35
      %s142 = ssub.s32 %s24, %s31
      %s143 = sor.u32 %s141, %s142
      %p144 = scmp.eq.s32.totalorder %s143, 0
      %s146 = sadd.s32 %s145, 1
      %s147 = scalar_select %p144, %s145, %s146
      %p150 = pneg %p144
      %p151 = scmp.eq.s32.totalorder %s16, 1
      %p152 = por %p150, %p151
      %p153 = scmp.ne.s32.totalorder %s145, %s148
      %p154 = scmp.eq.s32.totalorder %s16, 0
      %p155 = por %p153, %p154
      %p156 = scmp.ne.s32.totalorder %s145, %s148
      %p157 = scmp.eq.s32.totalorder %s21, 1
      %p158 = por %p156, %p157
      %p159 = scmp.ne.s32.totalorder %s148, %s149
      %p160 = scmp.eq.s32.totalorder %s21, 0
      %p161 = por %p159, %p160
      %p162 = scmp.ne.s32.totalorder %s148, %s149
      %p163 = scmp.eq.s32.totalorder %s22, 1
      %p164 = por %p162, %p163
      %p166 = scmp.ne.s32.totalorder %s149, %s165
      %p167 = scmp.eq.s32.totalorder %s22, 0
      %p168 = por %p166, %p167
      %p169 = scmp.le.s32.totalorder 1, %s16
      %p170 = scmp.lt.s32.totalorder %s16, 3
      %p171 = pnand %p169, %p170
      %p172 = pneg %p171
      // Predicated region
      $region9: #{tpu_custom_call.1} parent=5 // pred_check
        _
      $region10: #{tpu_custom_call.1} parent=5 // pred_check_branch
        %174 = sbr.rel (%p171) target = $region12
      $region11: #{tpu_custom_call.1} parent=5 // pred_region
        %s175 = ssub.s32 %s16, 1
        // Predicated region
        $region13: #{tpu_custom_call.1} parent=11 // pred_check
          %p176 = pneg %p105
        $region14: #{tpu_custom_call.1} parent=11 // pred_check_branch
          %178 = sbr.rel (%p176) target = $region16
        $region15: #{tpu_custom_call.1} parent=11 // pred_region
          _
        $region16: #{tpu_custom_call.1} parent=11 // pred_fallthru
          _
      $region12: #{tpu_custom_call.1} parent=5 // pred_fallthru
        _
      %p179 = scmp.lt.s32.totalorder %s16, 2
      // Predicated region
      $region17: #{tpu_custom_call.1} parent=5 // pred_check
        %p180 = pneg %p179
      $region18: #{tpu_custom_call.1} parent=5 // pred_check_branch
        %182 = sbr.rel (%p180) target = $region20
      $region19: #{tpu_custom_call.1} parent=5 // pred_region
        // Predicated region
        $region21: #{tpu_custom_call.1} parent=19 // pred_check
          %p183 = pneg %p50
        $region22: #{tpu_custom_call.1} parent=19 // pred_check_branch
          %185 = sbr.rel (%p183) target = $region24
        $region23: #{tpu_custom_call.1} parent=19 // pred_region
          %s186 = sand.u32 %s40, 1
          %s187 = scalar_lea.sflag [#allocation3], %s186
          %s188 = sand.u32 %s40, 1
          %s189 = smul.addr %s188, 8
          %s190 = scalar_lea.vmem [#allocation2], %s189
          %192 = vsyncadd %s187, 0
          %s193 = sadd.s32 %s24, %s23
          %s194 = smul.addr %s193, 8
          %s195 = scalar_lea.hbm %s0, %s194
          %s197 = sshll.u32 %s195, 4
          %s198 = int_to_ptr.hbm [resolvable:$true] %s197
          %s199 = sshll.u32 %s190, 4
          %s200 = int_to_ptr.vmem [resolvable:$true] %s199
          %202 = dma.hbm_to_vmem [thread:$0]  %s198, 128, %s200, %s187
        $region24: #{tpu_custom_call.1} parent=19 // pred_fallthru
          _
        // Predicated region
        $region25: #{tpu_custom_call.1} parent=19 // pred_check
          %p203 = pneg %p78
        $region26: #{tpu_custom_call.1} parent=19 // pred_check_branch
          %205 = sbr.rel (%p203) target = $region28
        $region27: #{tpu_custom_call.1} parent=19 // pred_region
          %p206 = scmp.lt.s32.totalorder %s23, 1
          %s207 = scalar_select %p206, %s23, 1
          %p208 = scmp.lt.s32.totalorder %s24, 0
          %s209 = scalar_select %p208, %s24, 0
          %s210 = sadd.s32 %s209, %s207
          %s211 = smul.addr %s210, 8
          %s212 = scalar_lea.vmem %s1, %s211
        $region28: #{tpu_custom_call.1} parent=19 // pred_fallthru
          _
        // Predicated region
        $region29: #{tpu_custom_call.1} parent=19 // pred_check
          %p213 = pneg %p127
        $region30: #{tpu_custom_call.1} parent=19 // pred_check_branch
          %215 = sbr.rel (%p213) target = $region32
        $region31: #{tpu_custom_call.1} parent=19 // pred_region
          %p216 = scmp.lt.s32.totalorder %s23, 1
          %s217 = scalar_select %p216, %s23, 1
          %p218 = scmp.lt.s32.totalorder %s24, 0
          %s219 = scalar_select %p218, %s24, 0
          %s220 = sadd.s32 %s219, %s217
          %s221 = smul.addr %s220, 8
          %s222 = scalar_lea.vmem %s3, %s221
        $region32: #{tpu_custom_call.1} parent=19 // pred_fallthru
          _
      $region20: #{tpu_custom_call.1} parent=5 // pred_fallthru
        _
      %p223 = scmp.le.s32.totalorder 1, %s16
      %p224 = scmp.lt.s32.totalorder %s16, 3
      %p225 = pnand %p223, %p224
      %p226 = pneg %p225
      // Predicated region
      $region33: #{tpu_custom_call.1} parent=5 // pred_check
        _
      $region34: #{tpu_custom_call.1} parent=5 // pred_check_branch
        %228 = sbr.rel (%p225) target = $region36
      $region35: #{tpu_custom_call.1} parent=5 // pred_region
        %s229 = ssub.s32 %s16, 1
        %s230 = sand.u32 %s43, 1
        %s231 = scalar_lea.sflag [#allocation3], %s230
        %s232 = sand.u32 %s43, 1
        %s233 = smul.addr %s232, 8
        %s234 = scalar_lea.vmem [#allocation2], %s233
        // Predicated region
        $region37: #{tpu_custom_call.1} parent=35 // pred_check
          %p235 = pneg %p56
        $region38: #{tpu_custom_call.1} parent=35 // pred_check_branch
          %237 = sbr.rel (%p235) target = $region40
        $region39: #{tpu_custom_call.1} parent=35 // pred_region
          %239 = dma.done %s231, 128
        $region40: #{tpu_custom_call.1} parent=35 // pred_fallthru
          _
        %s240 = sand.u32 %s43, 1
        %s241 = scalar_lea.sflag [#allocation3], %s240
        %s242 = sand.u32 %s43, 1
        %s243 = smul.addr %s242, 8
        %s244 = scalar_lea.vmem [#allocation2], %s243
        %p245 = pneg %p56
        %p246 = pneg %p53
        %p247 = scmp.lt.s32.totalorder %s25, 1
        %s248 = scalar_select %p247, %s25, 1
        %p249 = scmp.lt.s32.totalorder %s26, 0
        %s250 = scalar_select %p249, %s26, 0
        %s251 = sadd.s32 %s250, %s248
        %s252 = smul.addr %s251, 8
        %s253 = scalar_lea.vmem %s1, %s252
        %p254 = pneg %p84
        %p255 = pneg %p81
        %p256 = pneg %p105
        %p257 = pneg %p102
        %p258 = scmp.lt.s32.totalorder %s25, 1
        %s259 = scalar_select %p258, %s25, 1
        %p260 = scmp.lt.s32.totalorder %s26, 0
        %s261 = scalar_select %p260, %s26, 0
        %s262 = sadd.s32 %s261, %s259
        %s263 = smul.addr %s262, 8
        %s264 = scalar_lea.vmem %s3, %s263
        %p265 = pneg %p133
        %p266 = pneg %p130
        %p267 = pneg %p161
        %p268 = pneg %p158
        %s269 = sand.u32 %s148, 1
        %s270 = scalar_lea.sflag [#allocation4], %s269
        %s271 = sand.u32 %s148, 1
        %s272 = smul.addr %s271, 8
        %s273 = scalar_lea.vmem [#allocation5], %s272
        %p274 = scmp.lt.s32.totalorder %s25, 1
        %s275 = scalar_select %p274, %s25, 1
        %p276 = scmp.lt.s32.totalorder %s26, 0
        %s277 = scalar_select %p276, %s26, 0
        %s278 = sadd.s32 %s277, %s275
        %s279 = smul.addr %s278, 8
        %s280 = scalar_lea.vmem %s1, %s279
        %p281 = scmp.lt.s32.totalorder %s25, 1
        %s282 = scalar_select %p281, %s25, 1
        %p283 = scmp.lt.s32.totalorder %s26, 0
        %s284 = scalar_select %p283, %s26, 0
        %s285 = sadd.s32 %s284, %s282
        %s286 = smul.addr %s285, 8
        %s287 = scalar_lea.vmem %s3, %s286
        %v288 = vld [vmem:[%s234] sm:$0xff]
        %v289 = vld [vmem:[%s280] sm:$0xff]
        %v290 = vld [vmem:[%s2] sm:$0xff]
        %v291 = vld [vmem:[%s2 + $0x8] sm:$0xff]
        %v292 = vld [vmem:[%s2 + $0x10] sm:$0xff]
        %v293 = vld [vmem:[%s2 + $0x18] sm:$0xff]
        %v294 = vld [vmem:[%s287] sm:$0xff]
        %vm295 = vcmask 261120
        %v297 = vsel %vm295, %v289, 0
        %299 = vmatpush.msra.mxu0 0.0
        %300 = vmatpush.msra.mxu0 0.0
        %301 = vmatpush.msra.mxu0 0.0
        %302 = vmatpush.msra.mxu0 0.0
        %303 = vmatpush.msra.mxu0 0.0
        %304 = vmatpush.msra.mxu0 0.0
        %305 = vmatpush.msra.mxu0 0.0
        %306 = vmatpush.msra.mxu0 0.0
        %307 = vmatpush.msra.mxu0 0.0
        %308 = vmatpush.msra.mxu0 0.0
        %309 = vmatpush.msra.mxu0 0.0
        %310 = vmatpush.msra.mxu0 0.0
        %311 = vmatpush.msra.mxu0 %v293
        %312 = vmatpush.msra.mxu0 %v292
        %313 = vmatpush.msra.mxu0 %v291
        %314 = vmatpush.msra.mxu0 %v290
        %315 = vmatmul.f32.gmra.mxu0 %v297
        %v316 = vpop.f32.mrf.mxu0
        %v317 = vadd.f32 0.0, %v316
        %318 = vdwg.mxu0
        %vm319 = vcmp.ne.s32.totalorder %v294, 0
        %v320 = vadd.f32 %v288, %v317
        %v321 = vsel %vm319, 1, 0
        %322 = vset.pattern.permute.xlu0 0
        %323 = vperm.xlu0 %322, %v321
        %v324 = vpop.permute.xlu0 %323
        %vm325 = vcmp.eq.s32.totalorder %v324, 1
        %v326 = vsel %vm325, %v320, %v288
        %327 = vst.msk [vmem:[%s273] sm:$0xff] %vm295, %v326
        %s328 = sand.u32 %s148, 1
        %s329 = scalar_lea.sflag [#allocation4], %s328
        %s330 = sand.u32 %s148, 1
        %s331 = smul.addr %s330, 8
        %s332 = scalar_lea.vmem [#allocation5], %s331
        // Predicated region
        $region41: #{tpu_custom_call.1} parent=35 // pred_check
          %p333 = pneg %p158
        $region42: #{tpu_custom_call.1} parent=35 // pred_check_branch
          %335 = sbr.rel (%p333) target = $region44
        $region43: #{tpu_custom_call.1} parent=35 // pred_region
          %337 = vsyncadd %s329, 0
          %s338 = sadd.s32 %s26, %s25
          %s339 = smul.addr %s338, 8
          %s340 = scalar_lea.hbm %s4, %s339
          %s342 = sshll.u32 %s332, 4
          %s343 = int_to_ptr.vmem [resolvable:$true] %s342
          %s344 = sshll.u32 %s340, 4
          %s345 = int_to_ptr.hbm [resolvable:$true] %s344
          %347 = dma.vmem_to_hbm [thread:$0]  %s343, 128, %s345, %s329
        $region44: #{tpu_custom_call.1} parent=35 // pred_fallthru
          _
      $region36: #{tpu_custom_call.1} parent=5 // pred_fallthru
        _
      %p348 = scmp.le.s32.totalorder 2, %s16
      // Predicated region
      $region45: #{tpu_custom_call.1} parent=5 // pred_check
        %p349 = pneg %p348
      $region46: #{tpu_custom_call.1} parent=5 // pred_check_branch
        %351 = sbr.rel (%p349) target = $region48
      $region47: #{tpu_custom_call.1} parent=5 // pred_region
        %s352 = ssub.s32 %s16, 2
        // Predicated region
        $region49: #{tpu_custom_call.1} parent=47 // pred_check
          %p353 = pneg %p164
        $region50: #{tpu_custom_call.1} parent=47 // pred_check_branch
          %355 = sbr.rel (%p353) target = $region52
        $region51: #{tpu_custom_call.1} parent=47 // pred_region
          %s356 = sand.u32 %s149, 1
          %s357 = scalar_lea.sflag [#allocation4], %s356
          %s358 = sand.u32 %s149, 1
          %s359 = smul.addr %s358, 8
          %s360 = scalar_lea.vmem [#allocation5], %s359
          %362 = dma.done %s357, 128
        $region52: #{tpu_custom_call.1} parent=47 // pred_fallthru
          _
      $region48: #{tpu_custom_call.1} parent=5 // pred_fallthru
        _
    $region6: #{tpu_custom_call.1} parent=1 // loop_footer
      %s20 = sadd.s32 1, %s16
    $region7: #{tpu_custom_call.1} parent=1 // loop_footer_branch
      %15 = sbr.rel target = $region3
    $region8: #{tpu_custom_call.1} parent=1 // loop_exit
      _
    %363 = vsyncpa [#allocation3], 1
    %s364 = scalar_lea.sflag [#allocation3], 1
    %365 = vsyncpa %s364, 1
    %366 = vsyncpa [#allocation4], 1
    %s367 = scalar_lea.sflag [#allocation4], 1
    %368 = vsyncpa %s367, 1

</llo_original>
